<compile_context>
chip_gen: v6e
topology: v6e:2x2x1
jax: 0.10.0
libtpu: 0.0.40
codegen_flags: <defaults>
</compile_context>

<pallas_src>
import functools

import jax
import jax.numpy as jnp
from jax import lax
from jax.experimental import pallas as pl
from jax.experimental.pallas import tpu as pltpu


def _mdca_kernel(logits_ref, partial_ref, *, total_rows, tiles_per_slice):
    s = pl.program_id(0)            # parallel slice index
    t = pl.program_id(1)            # batch-tile index within the slice

    @pl.when(t == 0)
    def _init():
        partial_ref[...] = jnp.zeros_like(partial_ref)

    x = logits_ref[...].astype(jnp.float32)                  # (TB, C)
    tb, c = x.shape

    # Row-wise softmax over classes (dim=1); one exact reciprocal per row
    # instead of TB*C per-element divides.
    m = jnp.max(x, axis=1, keepdims=True)
    e = jnp.exp(x - m)
    inv = pl.reciprocal(jnp.sum(e, axis=1, keepdims=True), approx=False)
    p = e * inv                                              # (TB, C)

    # Cheap padded-row mask: (TB, 1) row-id compare against a scalar, then a
    # single broadcast select.  Select (not multiply) so NaN/Inf produced by
    # softmax of stale VMEM padding is dropped, never propagated.
    tile_idx = s * tiles_per_slice + t          # logical (unclamped) tile id
    row_ids = lax.broadcasted_iota(jnp.int32, (tb, 1), 0) + tile_idx * tb
    p = jnp.where(row_ids < total_rows, p, 0.0)

    # Exact-f32 batch-axis reduction on the VPU: the reshape splits the batch
    # axis at sublane (8-row) boundaries, so axis=0 is a chain of (8, C) adds
    # (no MXU, no cross-lane work).  Accumulate straight into the resident
    # output block.
    partial_ref[...] += jnp.sum(p.reshape(tb // 8, 8, c), axis=0)


def _round_up(x, m):
    return (x + m - 1) // m * m


def _choose_tile_batch(batch, classes):
    # VMEM footprint per row is governed by the padded lane width (>=128).
    c_pad = max(128, _round_up(classes, 128))
    # Target ~4 MiB f32-equivalent logits blocks (up to 8192 rows).  Two
    # pipeline buffers plus ~3 tile-sized f32 softmax temporaries stay under
    # the explicit 40 MiB scoped-VMEM limit on every generation (v7x physical
    # VMEM is only 64 MiB).
    budget_rows = max(8, (4 * 1024 * 1024) // (4 * c_pad))
    tb = min(_round_up(batch, 8), 8192, budget_rows)
    return max(8, (tb // 8) * 8)


def mdca_loss(logits, target, *, tile_batch=None):
    """MDCA calibration loss.

    logits: (batch, classes) float (f32 or bf16; streamed as-is, upcast in the
            kernel).  target: (batch,) integer class indices.
    """
    batch, classes = logits.shape

    tb = tile_batch if tile_batch is not None else _choose_tile_batch(batch, classes)
    tb = max(8, (tb // 8) * 8)
    num_tiles = pl.cdiv(batch, tb)

    # Ceil-split the batch tiles across 2 parallel slices whenever there is
    # more than one tile (odd tile counts still use both slices; the ragged
    # tail is handled by clamping + the in-kernel row mask).
    num_slices = 2 if num_tiles >= 2 else 1
    tiles_per_slice = pl.cdiv(num_tiles, num_slices)

    def logits_map(s, t):
        # Clamp so the ragged tail of the second slice re-reads the last valid
        # block; its rows are fully masked to zero inside the kernel.
        return (jnp.minimum(s * tiles_per_slice + t, num_tiles - 1), 0)

    kernel = functools.partial(_mdca_kernel, total_rows=batch,
                               tiles_per_slice=tiles_per_slice)

    partials = pl.pallas_call(
        kernel,
        out_shape=jax.ShapeDtypeStruct((num_slices * 8, classes), jnp.float32),
        grid_spec=pltpu.PrefetchScalarGridSpec(
            num_scalar_prefetch=0,
            grid=(num_slices, tiles_per_slice),
            in_specs=[pl.BlockSpec((tb, classes), logits_map)],
            out_specs=pl.BlockSpec((8, classes), lambda s, t: (s, 0)),
        ),
        compiler_params=pltpu.CompilerParams(
            dimension_semantics=("parallel", "arbitrary"),
            vmem_limit_bytes=40 * 1024 * 1024),
        # TODO(synk): mark the slice axis CORE_PARALLEL on v7x (2 TCs) once the
        # core count can be queried portably; plain "parallel" is harmless on
        # single-TC chips.
    )(logits)

    # Tiny O(batch + classes) finalisation in plain JAX: per-class counts via
    # a scatter-add (no target stream in the kernel), then combine the
    # per-slice sublane partial sums, abs, mean.
    counts = jnp.zeros((classes,), jnp.float32).at[target.astype(jnp.int32)].add(1.0)
    per_class_sum_p = jnp.sum(partials, axis=0)               # (classes,)
    return jnp.sum(jnp.abs(per_class_sum_p - counts)) / (batch * classes)


def _mdca_ref(logits, target):
    # Pure-JAX reference mirroring the PyTorch loop.
    p = jax.nn.softmax(logits.astype(jnp.float32), axis=1)
    _, c = logits.shape
    loss = 0.0
    for k in range(c):
        avg_count = jnp.mean((target == k).astype(jnp.float32))
        avg_conf = jnp.mean(p[:, k])
        loss = loss + jnp.abs(avg_conf - avg_count)
    return loss / c


if __name__ == "__main__":
    key = jax.random.PRNGKey(0)
    k1, k2, k3, k4, k5, k6 = jax.random.split(key, 6)

    # Case 1: tiled path — 60 rows with tile_batch=16 gives a
    # (2 parallel slices) x (2 tiles) grid, a partial (masked) last tile, and
    # lane-dense classes=128.
    batch, classes = 60, 128
    logits = jax.random.normal(k1, (batch, classes), dtype=jnp.float32)
    target = jax.random.randint(k2, (batch,), 0, classes, dtype=jnp.int32)

    loss = mdca_loss(logits, target, tile_batch=16)
    jax.block_until_ready(loss)
    ref = _mdca_ref(logits, target)
    assert jnp.allclose(loss, ref, atol=1e-5, rtol=1e-5), (loss, ref)

    # Case 2: tiny shape with auto tile selection (single-block grid,
    # non-multiple-of-128 class count).
    b2, c2 = 8, 16
    logits2 = jax.random.normal(k3, (b2, c2), dtype=jnp.float32)
    target2 = jax.random.randint(k4, (b2,), 0, c2, dtype=jnp.int32)

    loss2 = mdca_loss(logits2, target2)
    jax.block_until_ready(loss2)
    ref2 = _mdca_ref(logits2, target2)
    assert jnp.allclose(loss2, ref2, atol=1e-5, rtol=1e-5), (loss2, ref2)

    # Case 3: odd tile count — 72 rows / tile_batch=16 -> 5 tiles split 3+3
    # over 2 slices (ceil-split), exercising the clamped/out-of-range tile
    # and the partially masked last tile.
    b3, c3 = 72, 128
    logits3 = jax.random.normal(k5, (b3, c3), dtype=jnp.float32)
    target3 = jax.random.randint(k6, (b3,), 0, c3, dtype=jnp.int32)

    loss3 = mdca_loss(logits3, target3, tile_batch=16)
    jax.block_until_ready(loss3)
    ref3 = _mdca_ref(logits3, target3)
    assert jnp.allclose(loss3, ref3, atol=1e-5, rtol=1e-5), (loss3, ref3)

    print("KERNEL_OK")
</pallas_src>

<mosaic_0001>
module attributes {stable_mosaic.version = 11 : i64} {
  func.func @_mdca_kernel(%arg0: i32, %arg1: i32, %arg2: memref<16x128xf32, #tpu.memory_space<vmem>>, %arg3: memref<8x128xf32, #tpu.memory_space<vmem>>) attributes {dimension_semantics = [#tpu.dimension_semantics<parallel>, #tpu.dimension_semantics<arbitrary>], iteration_bounds = array<i64: 2, 2>, scalar_prefetch = 0 : i64, scratch_operands = 0 : i64, tpu.core_type = #tpu.core_type<tc>, window_params = [{transform_indices = @transform_0, window_bounds = array<i64: 16, 128>}, {transform_indices = @transform_1, window_bounds = array<i64: 8, 128>}]} {
    %c0_i32 = arith.constant 0 : i32
    %0 = arith.cmpi eq, %arg1, %c0_i32 : i32
    %1 = arith.extui %0 : i1 to i32
    %c0_i32_0 = arith.constant 0 : i32
    %2 = arith.cmpi ne, %1, %c0_i32_0 : i32
    scf.if %2 {
      %cst_9 = arith.constant 0.000000e+00 : f32
      %31 = vector.broadcast %cst_9 : f32 to vector<8x128xf32>
      %c0_10 = arith.constant 0 : index
      %c0_11 = arith.constant 0 : index
      %32 = vector.load %arg3[%c0_10, %c0_11] : memref<8x128xf32, #tpu.memory_space<vmem>>, vector<8x128xf32>
      tpu.vector_store %arg3[%c0_10, %c0_11], %31 {strides = array<i32>} : memref<8x128xf32, #tpu.memory_space<vmem>>, vector<8x128xf32>,
    } else {
    }
    %c0 = arith.constant 0 : index
    %c0_1 = arith.constant 0 : index
    %3 = vector.load %arg2[%c0, %c0_1] : memref<16x128xf32, #tpu.memory_space<vmem>>, vector<16x128xf32>
    %cst = arith.constant dense<0xFF800000> : vector<16xf32>
    %4 = vector.multi_reduction <maximumf>, %3, %cst [1] : vector<16x128xf32> to vector<16xf32>
    %5 = vector.shape_cast %4 : vector<16xf32> to vector<16x1xf32>
    %6 = vector.broadcast %5 : vector<16x1xf32> to vector<16x128xf32>
    %7 = arith.subf %3, %6 : vector<16x128xf32>
    %8 = math.exp %7 : vector<16x128xf32>
    %cst_2 = arith.constant dense<0.000000e+00> : vector<16xf32>
    %9 = vector.multi_reduction <add>, %8, %cst_2 [1] : vector<16x128xf32> to vector<16xf32>
    %10 = vector.shape_cast %9 : vector<16xf32> to vector<16x1xf32>
    %11 = tpu.reciprocal %10 : vector<16x1xf32> -> vector<16x1xf32>
    %12 = vector.broadcast %11 : vector<16x1xf32> to vector<16x128xf32>
    %13 = arith.mulf %8, %12 : vector<16x128xf32>
    %c2_i32 = arith.constant 2 : i32
    %14 = arith.muli %arg0, %c2_i32 : i32
    %15 = arith.addi %14, %arg1 : i32
    %16 = tpu.iota {dimensions = array<i32: 0>} : vector<16x1xi32>
    %c16_i32 = arith.constant 16 : i32
    %17 = arith.muli %15, %c16_i32 : i32
    %18 = vector.broadcast %17 : i32 to vector<16x1xi32>
    %19 = arith.addi %16, %18 : vector<16x1xi32>
    %c60_i32 = arith.constant 60 : i32
    %20 = vector.broadcast %c60_i32 : i32 to vector<16x1xi32>
    %21 = arith.cmpi slt, %19, %20 : vector<16x1xi32>
    %cst_3 = arith.constant 0.000000e+00 : f32
    %22 = vector.shape_cast %21 : vector<16x1xi1> to vector<16x1xi1>
    %23 = vector.broadcast %22 : vector<16x1xi1> to vector<16x128xi1>
    %24 = vector.broadcast %cst_3 : f32 to vector<16x128xf32>
    %25 = arith.select %23, %13, %24 : vector<16x128xi1>, vector<16x128xf32>
    %c0_4 = arith.constant 0 : index
    %c0_5 = arith.constant 0 : index
    %26 = vector.load %arg3[%c0_4, %c0_5] : memref<8x128xf32, #tpu.memory_space<vmem>>, vector<8x128xf32>
    %27 = vector.shape_cast %25 : vector<16x128xf32> to vector<2x8x128xf32>
    %cst_6 = arith.constant dense<0.000000e+00> : vector<8x128xf32>
    %28 = vector.multi_reduction <add>, %27, %cst_6 [0] : vector<2x8x128xf32> to vector<8x128xf32>
    %29 = arith.addf %26, %28 : vector<8x128xf32>
    %c0_7 = arith.constant 0 : index
    %c0_8 = arith.constant 0 : index
    %30 = vector.load %arg3[%c0_7, %c0_8] : memref<8x128xf32, #tpu.memory_space<vmem>>, vector<8x128xf32>
    tpu.vector_store %arg3[%c0_7, %c0_8], %29 {strides = array<i32>} : memref<8x128xf32, #tpu.memory_space<vmem>>, vector<8x128xf32>,
    return
  }
  func.func @transform_0(%arg0: i32, %arg1: i32) -> (i32, i32) {
    %c2_i32 = arith.constant 2 : i32
    %0 = arith.muli %arg0, %c2_i32 : i32
    %1 = arith.addi %0, %arg1 : i32
    %c3_i32 = arith.constant 3 : i32
    %2 = arith.minsi %1, %c3_i32 : i32
    %c0_i32 = arith.constant 0 : i32
    %c0_i32_0 = arith.constant 0 : i32
    return %2, %c0_i32 : i32, i32
  }
  func.func @transform_1(%arg0: i32, %arg1: i32) -> (i32, i32) {
    %c0_i32 = arith.constant 0 : i32
    %c0_i32_0 = arith.constant 0 : i32
    return %arg0, %c0_i32 : i32, i32
  }
}

</mosaic_0001>

<llo_original>
// kernel: tpu_custom_call.1
$region0: #{tpu_custom_call.1}
  #allocation0 [shape = 'u32[]', space=smem, size = 0x4, offset = 0x4, fixed_abs, tag = 'smem constant byte address 0x4 - core index']
  #allocation1 [shape = 'u32[144,128]{1,0:T(1,128)}', space=vmem, size = 0x12000, scoped, tag = 'internal scratch']
  %s0 = inlined_call_operand.hbm [shape: f32[60,128], index: 0, kind: input, shape index: {}]
  %s1 = inlined_call_operand.hbm [shape: f32[16,128], index: 1, kind: output, shape index: {}]
  %s2 = sld [smem:[#allocation0]]
  $region45: #{tpu_custom_call.1} parent=0
    _
  %s4 = ssub.s32 1, %s2
  %s5 = scalar_select 0, %s4, %s2
  $region1: #{tpu_custom_call.1} parent=0
    #allocation2 [shape = 'u8[16384]{0}', space=vmem, size = 0x4000, scoped, tag = 'input window, operand 0']
    #allocation3 [shape = 's32[2]{0}', space=sflag, size = 0x8, scoped, tag = 'scoped memory for tpu_custom_call.1']
    #allocation4 [shape = 's32[2]{0}', space=sflag, size = 0x8, scoped, tag = 'scoped memory for tpu_custom_call.1']
    #allocation5 [shape = 'u8[8192]{0}', space=vmem, size = 0x2000, scoped, tag = 'output window, operand 0']
    %6 = vsyncpa [#allocation3], 0
    %s7 = scalar_lea.sflag [#allocation3], 1
    %8 = vsyncpa %s7, 0
    %9 = vsyncpa [#allocation4], 0
    %s10 = scalar_lea.sflag [#allocation4], 1
    %11 = vsyncpa %s10, 0
    loop: start=0, step=1, limit=6
    $region2: #{tpu_custom_call.1} parent=1 // loop_pre_header
      _
    $region3: #{tpu_custom_call.1} parent=1 // loop_header
      %s13 = sphi 0, %s17
      %p14 = scmp.ge.s32.totalorder %s13, 6
      %s20 = sphi 0, %s32
      %s21 = sphi 0, %s28
      %s22 = sphi 0, %s20
      %s23 = sphi 0, %s21
      %s24 = sphi 0, %s22
      %s25 = sphi 0, %s23
      %s43 = sphi 0, %s45
      %s46 = sphi 0, %s43
      %s47 = sphi 0, %s46
      %s63 = sphi 0, %s47
      %s69 = sphi 0, %s71
      %s72 = sphi 0, %s69
      %s73 = sphi 0, %s72
      %s89 = sphi 0, %s73
    $region4: #{tpu_custom_call.1} parent=1 // loop_header_branch
      %16 = sbr.rel (%p14) target = $region8
    $region5: #{tpu_custom_call.1} parent=1 // loop_body
      %s18 = ssub.s32 %s13, 1
      %s19 = ssub.s32 %s13, 2
      %s26 = sadd.s32 1, %s21
      %p27 = scmp.ge.s32.totalorder %s26, 2
      %s28 = scalar_select %p27, 0, %s26
      %s29 = sadd.s32 1, %s20
      %s30 = scalar_select %p27, %s29, %s20
      %p31 = scmp.ge.s32.totalorder %s30, 2
      %s32 = scalar_select %p31, 0, %s30
      %s33 = smul.u32 %s20, 2
      %s34 = sadd.s32 %s33, %s21
      %p35 = scmp.lt.s32.totalorder %s34, 3
      %s36 = scalar_select %p35, %s34, 3
      %s37 = smul.u32 %s32, 2
      %s38 = sadd.s32 %s37, %s28
      %p39 = scmp.lt.s32.totalorder %s38, 3
      %s40 = scalar_select %p39, %s38, 3
      %s41 = ssub.s32 %s36, %s40
      %p42 = scmp.eq.s32.totalorder %s41, 0
      %s44 = sadd.s32 %s43, 1
      %s45 = scalar_select %p42, %s43, %s44
      %p48 = pneg %p42
      %p49 = scmp.eq.s32.totalorder %s13, 3
      %p50 = por %p48, %p49
      %p51 = scmp.ne.s32.totalorder %s43, %s46
      %p52 = scmp.eq.s32.totalorder %s13, 0
      %p53 = por %p51, %p52
      %p54 = scmp.ne.s32.totalorder %s43, %s46
      %p55 = scmp.eq.s32.totalorder %s18, 3
      %p56 = por %p54, %p55
      %p57 = scmp.ne.s32.totalorder %s46, %s47
      %p58 = scmp.eq.s32.totalorder %s18, 0
      %p59 = por %p57, %p58
      %p60 = scmp.ne.s32.totalorder %s46, %s47
      %p61 = scmp.eq.s32.totalorder %s19, 3
      %p62 = por %p60, %p61
      %p64 = scmp.ne.s32.totalorder %s47, %s63
      %p65 = scmp.eq.s32.totalorder %s19, 0
      %p66 = por %p64, %p65
      %s67 = ssub.s32 %s20, %s32
      %p68 = scmp.eq.s32.totalorder %s67, 0
      %s70 = sadd.s32 %s69, 1
      %s71 = scalar_select %p68, %s69, %s70
      %p74 = pneg %p68
      %p75 = scmp.eq.s32.totalorder %s13, 3
      %p76 = por %p74, %p75
      %p77 = scmp.ne.s32.totalorder %s69, %s72
      %p78 = scmp.eq.s32.totalorder %s13, 0
      %p79 = por %p77, %p78
      %p80 = scmp.ne.s32.totalorder %s69, %s72
      %p81 = scmp.eq.s32.totalorder %s18, 3
      %p82 = por %p80, %p81
      %p83 = scmp.ne.s32.totalorder %s72, %s73
      %p84 = scmp.eq.s32.totalorder %s18, 0
      %p85 = por %p83, %p84
      %p86 = scmp.ne.s32.totalorder %s72, %s73
      %p87 = scmp.eq.s32.totalorder %s19, 3
      %p88 = por %p86, %p87
      %p90 = scmp.ne.s32.totalorder %s73, %s89
      %p91 = scmp.eq.s32.totalorder %s19, 0
      %p92 = por %p90, %p91
      %p93 = scmp.le.s32.totalorder 1, %s13
      %p94 = scmp.lt.s32.totalorder %s13, 5
      %p95 = pnand %p93, %p94
      %p96 = pneg %p95
      // Predicated region
      $region9: #{tpu_custom_call.1} parent=5 // pred_check
        _
      $region10: #{tpu_custom_call.1} parent=5 // pred_check_branch
        %98 = sbr.rel (%p95) target = $region12
      $region11: #{tpu_custom_call.1} parent=5 // pred_region
        %s99 = ssub.s32 %s13, 1
      $region12: #{tpu_custom_call.1} parent=5 // pred_fallthru
        _
      %p100 = scmp.lt.s32.totalorder %s13, 4
      // Predicated region
      $region13: #{tpu_custom_call.1} parent=5 // pred_check
        %p101 = pneg %p100
      $region14: #{tpu_custom_call.1} parent=5 // pred_check_branch
        %103 = sbr.rel (%p101) target = $region16
      $region15: #{tpu_custom_call.1} parent=5 // pred_region
        // Predicated region
        $region17: #{tpu_custom_call.1} parent=15 // pred_check
          %p104 = pneg %p53
        $region18: #{tpu_custom_call.1} parent=15 // pred_check_branch
          %106 = sbr.rel (%p104) target = $region20
        $region19: #{tpu_custom_call.1} parent=15 // pred_region
          %s107 = sand.u32 %s43, 1
          %s108 = scalar_lea.sflag [#allocation3], %s107
          %s109 = sand.u32 %s43, 1
          %s110 = smul.addr %s109, 16
          %s111 = scalar_lea.vmem [#allocation2], %s110
          %s112 = smul.u32 %s20, 2
          %s113 = sadd.s32 %s112, %s21
          %p114 = scmp.lt.s32.totalorder %s113, 3
          %s115 = scalar_select %p114, %s113, 3
          %s116 = smul.u32 2, %s115
          %s118 = ssub.s32 256, 256
          %119 = vsyncadd %s108, %s118
          %s120 = smul.addr %s116, 128
          %s121 = scalar_lea.hbm %s0, %s120
          %s122 = sshll.u32 %s111, 4
          %s123 = int_to_ptr.vmem [resolvable:$true] %s122
          %128 = dma.hbm_to_vmem [thread:$0]  %s121, 256, %s123, %s108, 128, 128, 8
        $region20: #{tpu_custom_call.1} parent=15 // pred_fallthru
          _
      $region16: #{tpu_custom_call.1} parent=5 // pred_fallthru
        _
      %p129 = scmp.le.s32.totalorder 1, %s13
      %p130 = scmp.lt.s32.totalorder %s13, 5
      %p131 = pnand %p129, %p130
      %p132 = pneg %p131
      // Predicated region
      $region21: #{tpu_custom_call.1} parent=5 // pred_check
        _
      $region22: #{tpu_custom_call.1} parent=5 // pred_check_branch
        %134 = sbr.rel (%p131) target = $region24
      $region23: #{tpu_custom_call.1} parent=5 // pred_region
        %s135 = ssub.s32 %s13, 1
        %s136 = sand.u32 %s46, 1
        %s137 = scalar_lea.sflag [#allocation3], %s136
        %s138 = sand.u32 %s46, 1
        %s139 = smul.addr %s138, 16
        %s140 = scalar_lea.vmem [#allocation2], %s139
        // Predicated region
        $region25: #{tpu_custom_call.1} parent=23 // pred_check
          %p141 = pneg %p59
        $region26: #{tpu_custom_call.1} parent=23 // pred_check_branch
          %143 = sbr.rel (%p141) target = $region28
        $region27: #{tpu_custom_call.1} parent=23 // pred_region
          %144 = dma.done %s137, 256
        $region28: #{tpu_custom_call.1} parent=23 // pred_fallthru
          _
        %s145 = sand.u32 %s46, 1
        %s146 = scalar_lea.sflag [#allocation3], %s145
        %s147 = sand.u32 %s46, 1
        %s148 = smul.addr %s147, 16
        %s149 = scalar_lea.vmem [#allocation2], %s148
        %p150 = pneg %p59
        %p151 = pneg %p56
        %p152 = pneg %p85
        %p153 = pneg %p82
        %s154 = sand.u32 %s72, 1
        %s155 = scalar_lea.sflag [#allocation4], %s154
        %s156 = sand.u32 %s72, 1
        %s157 = smul.addr %s156, 8
        %s158 = scalar_lea.vmem [#allocation5], %s157
        %s159 = smul.u32 %s22, 2
        %s160 = sadd.s32 %s159, %s23
        %p161 = scmp.lt.s32.totalorder %s160, 3
        %s162 = scalar_select %p161, %s160, 3
        %s163 = smul.u32 2, %s162
        %p164 = scmp.eq.s32.totalorder %s23, 0
        // Predicated region
        $region29: #{tpu_custom_call.1} parent=23 // pred_check
          %p165 = pneg %p164
        $region30: #{tpu_custom_call.1} parent=23 // pred_check_branch
          %167 = sbr.rel (%p165) target = $region32
        $region31: #{tpu_custom_call.1} parent=23 // pred_region
          %168 = vst [vmem:[%s158] sm:$0xff] 0.0
        $region32: #{tpu_custom_call.1} parent=23 // pred_fallthru
          _
        %v169 = vld [vmem:[%s140] sm:$0xff]
        %v170 = vld [vmem:[%s140 + $0x8] sm:$0xff]
        %171 = vmax.xlane.f32.xlu0 %v169
        %v172 = vpop.xlane.xlu0 %171
        %173 = vmax.xlane.f32.xlu0 %v170
        %v174 = vpop.xlane.xlu0 %173
        %v175 = vsub.f32 %v169, %v172
        %v176 = vsub.f32 %v170, %v174
        %v177 = vmul.f32 %v175, 1.442695
        %v178 = vpow.pop %v177
        %v179 = vmul.f32 %v176, 1.442695
        %v180 = vpow.pop %v179
        %181 = vadd.xlane.f32.xlu0 %v178
        %v182 = vpop.xlane.xlu0 %181
        %183 = vadd.xlane.f32.xlu0 %v180
        %v184 = vpop.xlane.xlu0 %183
        %v185 = vrcp.pop %v182
        %v186 = vrcp.pop %v184
        %v187 = vmul.f32 %v178, %v185
        %v188 = vmul.f32 %v180, %v186
        %s189 = smul.u32 %s22, 2
        %s190 = sadd.s32 %s189, %s23
        %v191 = vlaneseq
        %v192 = vshrl.u32 %v191, 7
        %v193 = vadd.s32 %v192, 8
        %s194 = smul.u32 %s190, 16
        %v195 = vstv %s194
        %v196 = vadd.s32 %v192, %v195
        %v197 = vadd.s32 %v193, %v195
        %vm198 = vcmp.lt.s32.totalorder %v196, 60
        %vm199 = vcmp.lt.s32.totalorder %v197, 60
        %v200 = vsel %vm198, 1, 0
        %v201 = vsel %vm199, 1, 0
        %vm202 = vcmp.eq.s32.totalorder %v200, 1
        %vm203 = vcmp.eq.s32.totalorder %v201, 1
        %v204 = vsel %vm202, %v187, 0.0
        %v205 = vsel %vm203, %v188, 0.0
        %v206 = vld [vmem:[%s158] sm:$0xff]
        %v207 = vadd.f32 %v204, %v205
        %v208 = vadd.f32 %v206, %v207
        %209 = vst [vmem:[%s158] sm:$0xff] %v208
        %s210 = sand.u32 %s72, 1
        %s211 = scalar_lea.sflag [#allocation4], %s210
        %s212 = sand.u32 %s72, 1
        %s213 = smul.addr %s212, 8
        %s214 = scalar_lea.vmem [#allocation5], %s213
        // Predicated region
        $region33: #{tpu_custom_call.1} parent=23 // pred_check
          %p215 = pneg %p82
        $region34: #{tpu_custom_call.1} parent=23 // pred_check_branch
          %217 = sbr.rel (%p215) target = $region36
        $region35: #{tpu_custom_call.1} parent=23 // pred_region
          %s219 = ssub.s32 128, 128
          %220 = vsyncadd %s211, %s219
          %s221 = smul.addr %s22, 128
          %s222 = scalar_lea.hbm %s1, %s221
          %s224 = sshll.u32 %s214, 4
          %s225 = int_to_ptr.vmem [resolvable:$true] %s224
          %227 = dma.vmem_to_hbm [thread:$0]  %s225, 128, %s222, %s211
        $region36: #{tpu_custom_call.1} parent=23 // pred_fallthru
          _
      $region24: #{tpu_custom_call.1} parent=5 // pred_fallthru
        _
      %p228 = scmp.le.s32.totalorder 2, %s13
      // Predicated region
      $region37: #{tpu_custom_call.1} parent=5 // pred_check
        %p229 = pneg %p228
      $region38: #{tpu_custom_call.1} parent=5 // pred_check_branch
        %231 = sbr.rel (%p229) target = $region40
      $region39: #{tpu_custom_call.1} parent=5 // pred_region
        %s232 = ssub.s32 %s13, 2
        // Predicated region
        $region41: #{tpu_custom_call.1} parent=39 // pred_check
          %p233 = pneg %p88
        $region42: #{tpu_custom_call.1} parent=39 // pred_check_branch
          %235 = sbr.rel (%p233) target = $region44
        $region43: #{tpu_custom_call.1} parent=39 // pred_region
          %s236 = sand.u32 %s73, 1
          %s237 = scalar_lea.sflag [#allocation4], %s236
          %s238 = sand.u32 %s73, 1
          %s239 = smul.addr %s238, 8
          %s240 = scalar_lea.vmem [#allocation5], %s239
          %241 = dma.done %s237, 128
        $region44: #{tpu_custom_call.1} parent=39 // pred_fallthru
          _
      $region40: #{tpu_custom_call.1} parent=5 // pred_fallthru
        _
    $region6: #{tpu_custom_call.1} parent=1 // loop_footer
      %s17 = sadd.s32 1, %s13
    $region7: #{tpu_custom_call.1} parent=1 // loop_footer_branch
      %12 = sbr.rel target = $region3
    $region8: #{tpu_custom_call.1} parent=1 // loop_exit
      _
    %242 = vsyncpa [#allocation3], 1
    %s243 = scalar_lea.sflag [#allocation3], 1
    %244 = vsyncpa %s243, 1
    %245 = vsyncpa [#allocation4], 1
    %s246 = scalar_lea.sflag [#allocation4], 1
    %247 = vsyncpa %s246, 1

</llo_original>
